<compile_context>
chip_gen: v5e
topology: v5e:2x2
jax: 0.10.0
libtpu: 0.0.40
codegen_flags: <defaults>
</compile_context>

<pallas_src>
import functools

import jax
import jax.numpy as jnp
from jax.experimental import pallas as pl
from jax.experimental.pallas import tpu as pltpu


def _cdiv(a, b):
    return -(-a // b)


def _vmem_limit_bytes():
    """Per-core VMEM limit with headroom, derived from the actual chip."""
    cap = 64 << 20  # conservative default (v7x per-core VMEM)
    try:
        info = pltpu.get_tpu_info()
        cap = int(getattr(info, "vmem_capacity_bytes", cap))
    except Exception:
        pass
    # ~85% of physical, capped a bit below v5e/v6e's 128 MiB.
    return max(32 << 20, min(int(cap * 0.85), 112 << 20))


def _block_byte_factor(dtype_bytes):
    # 2x double-buffered input + 2x double-buffered output blocks, plus the f32
    # pooling temporary for sub-32-bit inputs (x.astype(f32) materializes a
    # full-block copy: 4/dtype_bytes in units of the block size).
    extra = 0 if dtype_bytes >= 4 else 4 // dtype_bytes
    return 4 + extra


def _pick_bt(B, per_image_bytes, factor, budget_bytes):
    """Batch-tile size: big blocks, but an even (and >=4 when possible) grid."""
    bt_max = min(
        B,
        max(1, (8 << 20) // max(per_image_bytes, 1)),              # ~8 MiB block cap
        max(1, budget_bytes // max(factor * per_image_bytes, 1)),  # VMEM fit
    )
    target_steps = min(4, B)
    best_score, best_bt = None, 1
    for bt in range(bt_max, 0, -1):
        n = _cdiv(B, bt)
        score = (
            n % 2 == 0,        # both v7x TensorCores get equal work
            n >= target_steps,  # enough steps to hide head/tail DMA
            B % bt == 0,        # balanced tiles (no ragged waste)
            bt,                 # otherwise: biggest blocks
        )
        if best_score is None or score > best_score:
            best_score, best_bt = score, bt
    return best_bt


# --------------------------- main (single-pass) kernel ---------------------------

def _se_block_kernel(x_ref, w1t_ref, w2t_ref, o_ref, *, inv_hw):
    # x_ref  : (bt, C, HW) batch tile (true HW, no padding)
    # w1t_ref: (C, Cr)  == W1.T (pre-transposed in the wrapper)
    # w2t_ref: (Cr, C)  == W2.T
    x = x_ref[...]

    # squeeze: spatial mean, f32 accumulation (safe for bf16 inputs)
    pooled = jnp.sum(x.astype(jnp.float32), axis=-1) * inv_hw               # (bt, C)

    # excitation MLP (no in-kernel transposes)
    h = jnp.dot(pooled, w1t_ref[...], preferred_element_type=jnp.float32)   # (bt, Cr)
    h = jnp.where(h >= 0, h, 0.1 * h)                                       # LeakyReLU(0.1)
    y = jnp.dot(h, w2t_ref[...], preferred_element_type=jnp.float32)        # (bt, C)
    y = y * jnp.clip(y + 3.0, 0.0, 6.0) * (1.0 / 6.0)                       # HSwish

    # scale: broadcast per-channel gate over the spatial axis
    o_ref[...] = x * y[:, :, None].astype(x.dtype)


# --------------------- fallback (spatial-chunked) kernels ------------------------

def _se_gates_kernel(x_ref, w1t_ref, w2t_ref, g_ref, acc_ref, *, inv_hw, hw, chunk):
    s = pl.program_id(1)

    @pl.when(s == 0)
    def _():
        acc_ref[...] = jnp.zeros_like(acc_ref)

    xf = x_ref[...].astype(jnp.float32)                    # (1, C, chunk)
    if hw % chunk != 0:
        # mask the ragged tail chunk (padding content is undefined)
        lane = jax.lax.broadcasted_iota(jnp.int32, xf.shape, 2)
        xf = jnp.where(lane < (hw - s * chunk), xf, 0.0)
    acc_ref[...] += jnp.sum(xf, axis=-1)                   # (1, C) f32 accumulator

    @pl.when(s == pl.num_programs(1) - 1)
    def _():
        pooled = acc_ref[...] * inv_hw
        h = jnp.dot(pooled, w1t_ref[...], preferred_element_type=jnp.float32)
        h = jnp.where(h >= 0, h, 0.1 * h)
        y = jnp.dot(h, w2t_ref[...], preferred_element_type=jnp.float32)
        y = y * jnp.clip(y + 3.0, 0.0, 6.0) * (1.0 / 6.0)
        g_ref[...] = y[:, None, :].astype(g_ref.dtype)     # (1, 1, C)


def _se_scale_kernel(x_ref, g_ref, o_ref):
    g = g_ref[...][:, 0, :]                                       # (1, C)
    o_ref[...] = x_ref[...] * g[:, :, None].astype(x_ref.dtype)


# ----------------------------------- wrapper -------------------------------------

def se_block(x, w1, w2, *, spatial_chunk=None):
    """x: (B, C, H, W); w1: (C//r, C); w2: (C, C//r). Returns (B, C, H, W).

    spatial_chunk: if set, force the spatial-chunked fallback path with this
    chunk size (used for testing; normally chosen automatically).
    """
    B, C, H, W = x.shape
    Cr = w1.shape[0]
    HW = H * W

    x_flat = x.reshape(B, C, HW)          # metadata-only reshape: no pad / slice
    w1t = w1.T                            # (C, Cr) -- transposed once, outside
    w2t = w2.T                            # (Cr, C)

    dtype_bytes = jnp.dtype(x.dtype).itemsize
    w_bytes = (w1.size + w2.size) * jnp.dtype(w1.dtype).itemsize
    per_image_bytes = C * HW * dtype_bytes
    factor = _block_byte_factor(dtype_bytes)

    vmem_limit = _vmem_limit_bytes()
    budget = int(vmem_limit * 0.9)
    inv_hw = 1.0 / float(HW)

    cost = pl.CostEstimate(
        flops=4 * B * C * Cr + 2 * B * C * HW,       # two tiny matmuls + scale
        transcendentals=0,
        bytes_accessed=2 * B * C * HW * dtype_bytes + w_bytes,
    )

    use_main = spatial_chunk is None and factor * per_image_bytes <= budget

    if use_main:
        bt = _pick_bt(B, per_image_bytes, factor, budget)
        grid = (_cdiv(B, bt),)            # ragged last batch tile is fine
        kernel = functools.partial(_se_block_kernel, inv_hw=inv_hw)
        out_flat = pl.pallas_call(
            kernel,
            out_shape=jax.ShapeDtypeStruct((B, C, HW), x.dtype),
            grid_spec=pltpu.PrefetchScalarGridSpec(
                num_scalar_prefetch=0,
                grid=grid,
                in_specs=[
                    pl.BlockSpec((bt, C, HW), lambda b: (b, 0, 0)),
                    pl.BlockSpec((C, Cr), lambda b: (0, 0)),
                    pl.BlockSpec((Cr, C), lambda b: (0, 0)),
                ],
                out_specs=pl.BlockSpec((bt, C, HW), lambda b: (b, 0, 0)),
            ),
            compiler_params=pltpu.CompilerParams(
                dimension_semantics=("parallel",),
                vmem_limit_bytes=vmem_limit,
            ),
            cost_estimate=cost,
        )(x_flat, w1t, w2t)
        return out_flat.reshape(B, C, H, W)

    # ---- fallback: spatial-chunked two-kernel path (single image > VMEM) ----
    # TODO(synk): if even a (1, C, 128) chunk exceeds VMEM (enormous C), the
    # channel axis would also need chunking; not implemented here.
    if spatial_chunk is not None:
        chunk = int(spatial_chunk)
    else:
        chunk = min(budget // max(factor * C * dtype_bytes, 1),
                    (8 << 20) // max(C * dtype_bytes, 1))
    if chunk >= HW:
        chunk = HW                         # block == full dim: always legal
    else:
        chunk = max(128, (chunk // 128) * 128)
    n_s = _cdiv(HW, chunk)

    gates_kernel = functools.partial(
        _se_gates_kernel, inv_hw=inv_hw, hw=HW, chunk=chunk)
    gates = pl.pallas_call(
        gates_kernel,
        out_shape=jax.ShapeDtypeStruct((B, 1, C), jnp.float32),
        grid_spec=pltpu.PrefetchScalarGridSpec(
            num_scalar_prefetch=0,
            grid=(B, n_s),
            in_specs=[
                pl.BlockSpec((1, C, chunk), lambda b, s: (b, 0, s)),
                pl.BlockSpec((C, Cr), lambda b, s: (0, 0)),
                pl.BlockSpec((Cr, C), lambda b, s: (0, 0)),
            ],
            out_specs=pl.BlockSpec((1, 1, C), lambda b, s: (b, 0, 0)),
            scratch_shapes=[pltpu.VMEM((1, C), jnp.float32)],
        ),
        compiler_params=pltpu.CompilerParams(
            dimension_semantics=("parallel", "arbitrary"),
            vmem_limit_bytes=vmem_limit,
        ),
    )(x_flat, w1t, w2t)

    out_flat = pl.pallas_call(
        _se_scale_kernel,
        out_shape=jax.ShapeDtypeStruct((B, C, HW), x.dtype),
        grid_spec=pltpu.PrefetchScalarGridSpec(
            num_scalar_prefetch=0,
            grid=(B, n_s),
            in_specs=[
                pl.BlockSpec((1, C, chunk), lambda b, s: (b, 0, s)),
                pl.BlockSpec((1, 1, C), lambda b, s: (b, 0, 0)),
            ],
            out_specs=pl.BlockSpec((1, C, chunk), lambda b, s: (b, 0, s)),
        ),
        compiler_params=pltpu.CompilerParams(
            dimension_semantics=("parallel", "parallel"),
            vmem_limit_bytes=vmem_limit,
        ),
        cost_estimate=cost,
    )(x_flat, gates)
    return out_flat.reshape(B, C, H, W)


def se_block_reference(x, w1, w2):
    """Pure-JAX reference matching the PyTorch forward."""
    y = jnp.mean(x, axis=(2, 3))                         # (B, C)
    y = y @ w1.T
    y = jnp.where(y >= 0, y, 0.1 * y)                    # LeakyReLU(0.1)
    y = y @ w2.T
    y = y * jnp.clip(y + 3.0, 0.0, 6.0) / 6.0            # HSwish
    return x * y[:, :, None, None]


if __name__ == "__main__":
    key = jax.random.PRNGKey(0)

    def run_case(shape, reduction, **kwargs):
        B, C, H, W = shape
        Cr = max(1, C // reduction)
        kx, k1, k2 = jax.random.split(jax.random.fold_in(key, C * H + B), 3)
        x = jax.random.normal(kx, shape, dtype=jnp.float32)
        # PyTorch Linear weight layout: (out_features, in_features)
        w1 = jax.random.normal(k1, (Cr, C), dtype=jnp.float32) * 0.5
        w2 = jax.random.normal(k2, (C, Cr), dtype=jnp.float32) * 0.5
        out = jax.block_until_ready(se_block(x, w1, w2, **kwargs))
        ref = se_block_reference(x, w1, w2)
        assert out.shape == shape
        assert jnp.allclose(out, ref, atol=1e-5, rtol=1e-5), \
            f"mismatch vs reference for {shape} {kwargs}"

    # Main path: module config channel=4, reduction=4 (hidden dim = 1).
    run_case((2, 4, 16, 16), 4)
    # Main path with an unaligned spatial size and a ragged last batch tile.
    run_case((3, 8, 12, 12), 4)
    # Spatial-chunked fallback path (forced), exercising the masked tail chunk.
    run_case((2, 8, 12, 12), 4, spatial_chunk=128)

    print("KERNEL_OK")
</pallas_src>

<mosaic_0001>
module attributes {stable_mosaic.version = 11 : i64} {
  func.func @_se_block_kernel(%arg0: i32, %arg1: memref<1x4x256xf32, #tpu.memory_space<vmem>>, %arg2: memref<4x1xf32, #tpu.memory_space<vmem>>, %arg3: memref<1x4xf32, #tpu.memory_space<vmem>>, %arg4: memref<1x4x256xf32, #tpu.memory_space<vmem>>) attributes {dimension_semantics = [#tpu.dimension_semantics<parallel>], iteration_bounds = array<i64: 2>, scalar_prefetch = 0 : i64, scratch_operands = 0 : i64, tpu.core_type = #tpu.core_type<tc>, window_params = [{transform_indices = @transform_0, window_bounds = array<i64: 1, 4, 256>}, {pipeline_mode = #tpu.pipeline_mode<synchronous>, transform_indices = @transform_1, window_bounds = array<i64: 4, 1>}, {pipeline_mode = #tpu.pipeline_mode<synchronous>, transform_indices = @transform_2, window_bounds = array<i64: 1, 4>}, {transform_indices = @transform_3, window_bounds = array<i64: 1, 4, 256>}]} {
    %c0 = arith.constant 0 : index
    %c0_0 = arith.constant 0 : index
    %c0_1 = arith.constant 0 : index
    %0 = vector.load %arg1[%c0, %c0_0, %c0_1] : memref<1x4x256xf32, #tpu.memory_space<vmem>>, vector<1x4x256xf32>
    %cst = arith.constant dense<0.000000e+00> : vector<1x4xf32>
    %1 = vector.multi_reduction <add>, %0, %cst [2] : vector<1x4x256xf32> to vector<1x4xf32>
    %cst_2 = arith.constant 3.906250e-03 : f32
    %2 = vector.broadcast %cst_2 : f32 to vector<1x4xf32>
    %3 = arith.mulf %1, %2 : vector<1x4xf32>
    %c0_3 = arith.constant 0 : index
    %c0_4 = arith.constant 0 : index
    %4 = vector.load %arg2[%c0_3, %c0_4] : memref<4x1xf32, #tpu.memory_space<vmem>>, vector<4x1xf32>
    %cst_5 = arith.constant dense<0.000000e+00> : vector<1x1xf32>
    %5 = tpu.matmul %3, %4, %cst_5 {dimension_numbers = #tpu.dot_dimension_numbers<[1], [0], [0], [1], [0, 0, 1, 1], [], []>} : vector<1x4xf32>, vector<4x1xf32>, vector<1x1xf32> -> vector<1x1xf32>
    %cst_6 = arith.constant 0.000000e+00 : f32
    %6 = vector.broadcast %cst_6 : f32 to vector<1x1xf32>
    %7 = arith.cmpf oge, %5, %6 : vector<1x1xf32>
    %cst_7 = arith.constant 1.000000e-01 : f32
    %8 = vector.broadcast %cst_7 : f32 to vector<1x1xf32>
    %9 = arith.mulf %8, %5 : vector<1x1xf32>
    %10 = arith.select %7, %5, %9 : vector<1x1xi1>, vector<1x1xf32>
    %c0_8 = arith.constant 0 : index
    %c0_9 = arith.constant 0 : index
    %11 = vector.load %arg3[%c0_8, %c0_9] : memref<1x4xf32, #tpu.memory_space<vmem>>, vector<1x4xf32>
    %cst_10 = arith.constant dense<0.000000e+00> : vector<1x4xf32>
    %12 = tpu.matmul %10, %11, %cst_10 {dimension_numbers = #tpu.dot_dimension_numbers<[1], [0], [0], [1], [0, 0, 1, 1], [], []>} : vector<1x1xf32>, vector<1x4xf32>, vector<1x4xf32> -> vector<1x4xf32>
    %cst_11 = arith.constant 3.000000e+00 : f32
    %13 = vector.broadcast %cst_11 : f32 to vector<1x4xf32>
    %14 = arith.addf %12, %13 : vector<1x4xf32>
    %cst_12 = arith.constant 0.000000e+00 : f32
    %cst_13 = arith.constant 6.000000e+00 : f32
    %15 = vector.broadcast %cst_12 : f32 to vector<1x4xf32>
    %16 = arith.maximumf %15, %14 : vector<1x4xf32>
    %17 = vector.broadcast %cst_13 : f32 to vector<1x4xf32>
    %18 = arith.minimumf %17, %16 : vector<1x4xf32>
    %19 = arith.mulf %12, %18 : vector<1x4xf32>
    %cst_14 = arith.constant 0.166666672 : f32
    %20 = vector.broadcast %cst_14 : f32 to vector<1x4xf32>
    %21 = arith.mulf %19, %20 : vector<1x4xf32>
    %22 = vector.shape_cast %21 : vector<1x4xf32> to vector<1x4x1xf32>
    %23 = vector.broadcast %22 : vector<1x4x1xf32> to vector<1x4x256xf32>
    %24 = arith.mulf %0, %23 : vector<1x4x256xf32>
    %c0_15 = arith.constant 0 : index
    %c0_16 = arith.constant 0 : index
    %c0_17 = arith.constant 0 : index
    %25 = vector.load %arg4[%c0_15, %c0_16, %c0_17] : memref<1x4x256xf32, #tpu.memory_space<vmem>>, vector<1x4x256xf32>
    tpu.vector_store %arg4[%c0_15, %c0_16, %c0_17], %24 {strides = array<i32>} : memref<1x4x256xf32, #tpu.memory_space<vmem>>, vector<1x4x256xf32>,
    return
  }
  func.func @transform_0(%arg0: i32) -> (i32, i32, i32) {
    %c0_i32 = arith.constant 0 : i32
    %c0_i32_0 = arith.constant 0 : i32
    %c0_i32_1 = arith.constant 0 : i32
    return %arg0, %c0_i32, %c0_i32_0 : i32, i32, i32
  }
  func.func @transform_1(%arg0: i32) -> (i32, i32) {
    %c0_i32 = arith.constant 0 : i32
    %c0_i32_0 = arith.constant 0 : i32
    %c0_i32_1 = arith.constant 0 : i32
    return %c0_i32, %c0_i32_0 : i32, i32
  }
  func.func @transform_2(%arg0: i32) -> (i32, i32) {
    %c0_i32 = arith.constant 0 : i32
    %c0_i32_0 = arith.constant 0 : i32
    %c0_i32_1 = arith.constant 0 : i32
    return %c0_i32, %c0_i32_0 : i32, i32
  }
  func.func @transform_3(%arg0: i32) -> (i32, i32, i32) {
    %c0_i32 = arith.constant 0 : i32
    %c0_i32_0 = arith.constant 0 : i32
    %c0_i32_1 = arith.constant 0 : i32
    return %arg0, %c0_i32, %c0_i32_0 : i32, i32, i32
  }
}

</mosaic_0001>

<llo_original>
// kernel: tpu_custom_call.1
$region0: #{tpu_custom_call.1}
  #allocation0 [shape = 'u32[]', space=smem, size = 0x4, offset = 0x4, fixed_abs, tag = 'smem constant byte address 0x4 - core index']
  #allocation1 [shape = 'u32[72,128]{1,0:T(1,128)}', space=vmem, size = 0x9000, scoped, tag = 'internal scratch']
  %s0 = inlined_call_operand.hbm [shape: f32[2,4,256], index: 0, kind: input, shape index: {}]
  %s1 = inlined_call_operand.vmem [shape: f32[4,1], index: 1, kind: input, shape index: {}]
  %s2 = inlined_call_operand.vmem [shape: f32[1,4], index: 2, kind: input, shape index: {}]
  %s3 = inlined_call_operand.hbm [shape: f32[2,4,256], index: 3, kind: output, shape index: {}]
  %s4 = sld [smem:[#allocation0]]
  $region49: #{tpu_custom_call.1} parent=0
    _
  %s6 = ssub.s32 1, %s4
  %s7 = scalar_select 0, %s6, %s4
  $region1: #{tpu_custom_call.1} parent=0
    #allocation2 [shape = 'u8[8192]{0}', space=vmem, size = 0x2000, scoped, tag = 'input window, operand 0']
    #allocation3 [shape = 's32[2]{0}', space=sflag, size = 0x8, scoped, tag = 'scoped memory for tpu_custom_call.1']
    #allocation4 [shape = 's32[2]{0}', space=sflag, size = 0x8, scoped, tag = 'scoped memory for tpu_custom_call.1']
    #allocation5 [shape = 'u8[8192]{0}', space=vmem, size = 0x2000, scoped, tag = 'output window, operand 0']
    %8 = vsyncpa [#allocation3], 0
    %s9 = scalar_lea.sflag [#allocation3], 1
    %10 = vsyncpa %s9, 0
    %11 = vsyncpa [#allocation4], 0
    %s12 = scalar_lea.sflag [#allocation4], 1
    %13 = vsyncpa %s12, 0
    loop: start=0, step=1, limit=4
    $region2: #{tpu_custom_call.1} parent=1 // loop_pre_header
      _
    $region3: #{tpu_custom_call.1} parent=1 // loop_header
      %s15 = sphi 0, %s19
      %p16 = scmp.ge.s32.totalorder %s15, 4
      %s25 = sphi 0, %s27
      %s28 = sphi 0, %s25
      %s29 = sphi 0, %s28
      %s45 = sphi 0, %s29
      %s49 = sphi 0, %s49
      %s51 = sphi 0, %s49
      %s52 = sphi 0, %s51
      %s66 = sphi 0, %s52
      %s70 = sphi 0, %s70
      %s72 = sphi 0, %s70
      %s73 = sphi 0, %s72
      %s87 = sphi 0, %s73
      %s93 = sphi 0, %s95
      %s96 = sphi 0, %s93
      %s97 = sphi 0, %s96
      %s113 = sphi 0, %s97
    $region4: #{tpu_custom_call.1} parent=1 // loop_header_branch
      %18 = sbr.rel (%p16) target = $region8
    $region5: #{tpu_custom_call.1} parent=1 // loop_body
      %s20 = ssub.s32 %s15, 1
      %s21 = ssub.s32 %s15, 2
      %s22 = sadd.s32 %s15, 1
      %s23 = ssub.s32 %s15, %s22
      %p24 = scmp.eq.s32.totalorder %s23, 0
      %s26 = sadd.s32 %s25, 1
      %s27 = scalar_select %p24, %s25, %s26
      %p30 = pneg %p24
      %p31 = scmp.eq.s32.totalorder %s15, 1
      %p32 = por %p30, %p31
      %p33 = scmp.ne.s32.totalorder %s25, %s28
      %p34 = scmp.eq.s32.totalorder %s15, 0
      %p35 = por %p33, %p34
      %p36 = scmp.ne.s32.totalorder %s25, %s28
      %p37 = scmp.eq.s32.totalorder %s20, 1
      %p38 = por %p36, %p37
      %p39 = scmp.ne.s32.totalorder %s28, %s29
      %p40 = scmp.eq.s32.totalorder %s20, 0
      %p41 = por %p39, %p40
      %p42 = scmp.ne.s32.totalorder %s28, %s29
      %p43 = scmp.eq.s32.totalorder %s21, 1
      %p44 = por %p42, %p43
      %p46 = scmp.ne.s32.totalorder %s29, %s45
      %p47 = scmp.eq.s32.totalorder %s21, 0
      %p48 = por %p46, %p47
      %s50 = sadd.s32 %s49, 1
      %p53 = scmp.eq.s32.totalorder %s15, 1
      %p54 = scmp.ne.s32.totalorder %s49, %s51
      %p55 = scmp.eq.s32.totalorder %s15, 0
      %p56 = por %p54, %p55
      %p57 = scmp.ne.s32.totalorder %s49, %s51
      %p58 = scmp.eq.s32.totalorder %s20, 1
      %p59 = por %p57, %p58
      %p60 = scmp.ne.s32.totalorder %s51, %s52
      %p61 = scmp.eq.s32.totalorder %s20, 0
      %p62 = por %p60, %p61
      %p63 = scmp.ne.s32.totalorder %s51, %s52
      %p64 = scmp.eq.s32.totalorder %s21, 1
      %p65 = por %p63, %p64
      %p67 = scmp.ne.s32.totalorder %s52, %s66
      %p68 = scmp.eq.s32.totalorder %s21, 0
      %p69 = por %p67, %p68
      %s71 = sadd.s32 %s70, 1
      %p74 = scmp.eq.s32.totalorder %s15, 1
      %p75 = scmp.ne.s32.totalorder %s70, %s72
      %p76 = scmp.eq.s32.totalorder %s15, 0
      %p77 = por %p75, %p76
      %p78 = scmp.ne.s32.totalorder %s70, %s72
      %p79 = scmp.eq.s32.totalorder %s20, 1
      %p80 = por %p78, %p79
      %p81 = scmp.ne.s32.totalorder %s72, %s73
      %p82 = scmp.eq.s32.totalorder %s20, 0
      %p83 = por %p81, %p82
      %p84 = scmp.ne.s32.totalorder %s72, %s73
      %p85 = scmp.eq.s32.totalorder %s21, 1
      %p86 = por %p84, %p85
      %p88 = scmp.ne.s32.totalorder %s73, %s87
      %p89 = scmp.eq.s32.totalorder %s21, 0
      %p90 = por %p88, %p89
      %s91 = ssub.s32 %s15, %s22
      %p92 = scmp.eq.s32.totalorder %s91, 0
      %s94 = sadd.s32 %s93, 1
      %s95 = scalar_select %p92, %s93, %s94
      %p98 = pneg %p92
      %p99 = scmp.eq.s32.totalorder %s15, 1
      %p100 = por %p98, %p99
      %p101 = scmp.ne.s32.totalorder %s93, %s96
      %p102 = scmp.eq.s32.totalorder %s15, 0
      %p103 = por %p101, %p102
      %p104 = scmp.ne.s32.totalorder %s93, %s96
      %p105 = scmp.eq.s32.totalorder %s20, 1
      %p106 = por %p104, %p105
      %p107 = scmp.ne.s32.totalorder %s96, %s97
      %p108 = scmp.eq.s32.totalorder %s20, 0
      %p109 = por %p107, %p108
      %p110 = scmp.ne.s32.totalorder %s96, %s97
      %p111 = scmp.eq.s32.totalorder %s21, 1
      %p112 = por %p110, %p111
      %p114 = scmp.ne.s32.totalorder %s97, %s113
      %p115 = scmp.eq.s32.totalorder %s21, 0
      %p116 = por %p114, %p115
      %p117 = scmp.le.s32.totalorder 1, %s15
      %p118 = scmp.lt.s32.totalorder %s15, 3
      %p119 = pnand %p117, %p118
      %p120 = pneg %p119
      // Predicated region
      $region9: #{tpu_custom_call.1} parent=5 // pred_check
        _
      $region10: #{tpu_custom_call.1} parent=5 // pred_check_branch
        %122 = sbr.rel (%p119) target = $region12
      $region11: #{tpu_custom_call.1} parent=5 // pred_region
        %s123 = ssub.s32 %s15, 1
        // Predicated region
        $region13: #{tpu_custom_call.1} parent=11 // pred_check
          %p124 = pneg %p62
        $region14: #{tpu_custom_call.1} parent=11 // pred_check_branch
          %126 = sbr.rel (%p124) target = $region16
        $region15: #{tpu_custom_call.1} parent=11 // pred_region
          _
        $region16: #{tpu_custom_call.1} parent=11 // pred_fallthru
          _
        // Predicated region
        $region17: #{tpu_custom_call.1} parent=11 // pred_check
          %p127 = pneg %p83
        $region18: #{tpu_custom_call.1} parent=11 // pred_check_branch
          %129 = sbr.rel (%p127) target = $region20
        $region19: #{tpu_custom_call.1} parent=11 // pred_region
          _
        $region20: #{tpu_custom_call.1} parent=11 // pred_fallthru
          _
      $region12: #{tpu_custom_call.1} parent=5 // pred_fallthru
        _
      %p130 = scmp.lt.s32.totalorder %s15, 2
      // Predicated region
      $region21: #{tpu_custom_call.1} parent=5 // pred_check
        %p131 = pneg %p130
      $region22: #{tpu_custom_call.1} parent=5 // pred_check_branch
        %133 = sbr.rel (%p131) target = $region24
      $region23: #{tpu_custom_call.1} parent=5 // pred_region
        // Predicated region
        $region25: #{tpu_custom_call.1} parent=23 // pred_check
          %p134 = pneg %p35
        $region26: #{tpu_custom_call.1} parent=23 // pred_check_branch
          %136 = sbr.rel (%p134) target = $region28
        $region27: #{tpu_custom_call.1} parent=23 // pred_region
          %s137 = sand.u32 %s25, 1
          %s138 = scalar_lea.sflag [#allocation3], %s137
          %s139 = sand.u32 %s25, 1
          %s140 = smul.addr %s139, 8
          %s141 = scalar_lea.vmem [#allocation2], %s140
          %143 = vsyncadd %s138, 0
          %s144 = smul.addr %s15, 2
          %s145 = smul.addr %s144, 4
          %s146 = scalar_lea.hbm %s0, %s145
          %s148 = sshll.u32 %s146, 4
          %s149 = int_to_ptr.hbm [resolvable:$true] %s148
          %s150 = sshll.u32 %s141, 4
          %s151 = int_to_ptr.vmem [resolvable:$true] %s150
          %153 = dma.hbm_to_vmem [thread:$0]  %s149, 128, %s151, %s138
        $region28: #{tpu_custom_call.1} parent=23 // pred_fallthru
          _
      $region24: #{tpu_custom_call.1} parent=5 // pred_fallthru
        _
      %p154 = scmp.le.s32.totalorder 1, %s15
      %p155 = scmp.lt.s32.totalorder %s15, 3
      %p156 = pnand %p154, %p155
      %p157 = pneg %p156
      // Predicated region
      $region29: #{tpu_custom_call.1} parent=5 // pred_check
        _
      $region30: #{tpu_custom_call.1} parent=5 // pred_check_branch
        %159 = sbr.rel (%p156) target = $region32
      $region31: #{tpu_custom_call.1} parent=5 // pred_region
        %s160 = ssub.s32 %s15, 1
        %s161 = sand.u32 %s28, 1
        %s162 = scalar_lea.sflag [#allocation3], %s161
        %s163 = sand.u32 %s28, 1
        %s164 = smul.addr %s163, 8
        %s165 = scalar_lea.vmem [#allocation2], %s164
        // Predicated region
        $region33: #{tpu_custom_call.1} parent=31 // pred_check
          %p166 = pneg %p41
        $region34: #{tpu_custom_call.1} parent=31 // pred_check_branch
          %168 = sbr.rel (%p166) target = $region36
        $region35: #{tpu_custom_call.1} parent=31 // pred_region
          %170 = dma.done %s162, 128
        $region36: #{tpu_custom_call.1} parent=31 // pred_fallthru
          _
        %s171 = sand.u32 %s28, 1
        %s172 = scalar_lea.sflag [#allocation3], %s171
        %s173 = sand.u32 %s28, 1
        %s174 = smul.addr %s173, 8
        %s175 = scalar_lea.vmem [#allocation2], %s174
        %p176 = pneg %p41
        %p177 = pneg %p38
        %p178 = pneg %p62
        %p179 = pneg %p59
        %p180 = pneg %p83
        %p181 = pneg %p80
        %p182 = pneg %p109
        %p183 = pneg %p106
        %s184 = sand.u32 %s96, 1
        %s185 = scalar_lea.sflag [#allocation4], %s184
        %s186 = sand.u32 %s96, 1
        %s187 = smul.addr %s186, 8
        %s188 = scalar_lea.vmem [#allocation5], %s187
        %v189 = vld [vmem:[%s165] sm:$0xff]
        %191 = vst [vmem:[#allocation1] ss:$2 sm:$0xff] %v189
        %v192 = vld.sshfl [vmem:[#allocation1] sm:$0xff pattern:$0x75316420]
        %v193 = vld.sshfl [vmem:[#allocation1 + $0x8] sm:$0xff pattern:$0x75316420]
        %vm196 = vcmask 1043456
        %v197 = vsel %vm196, %v192, 0.0
        %v198 = vsel %vm196, %v193, 0.0
        %v199 = vadd.f32 %v197, %v198
        %200 = vadd.xlane.f32.xlu0 %v199
        %v201 = vpop.xlane.xlu0 %200
        %v202 = vmul.f32 %v201, 0.00390625
        %v203 = vld [vmem:[%s1] sm:$0xf]
        %v205 = vlaneseq
        %v206 = vand.u32 %v205, 127
        %v207 = vperm.slane %v202, %v206
        %vm208 = vcmask 31744
        %v209 = vsel %vm208, %v207, 0
        %v212 = vsel %vm196, %v203, 0
        %214 = vmatpush.msra.mxu0 0.0
        %215 = vmatpush.msra.mxu0 0.0
        %216 = vmatpush.msra.mxu0 0.0
        %217 = vmatpush.msra.mxu0 0.0
        %218 = vmatpush.msra.mxu0 0.0
        %219 = vmatpush.msra.mxu0 0.0
        %220 = vmatpush.msra.mxu0 0.0
        %221 = vmatpush.msra.mxu0 0.0
        %222 = vmatpush.msra.mxu0 0.0
        %223 = vmatpush.msra.mxu0 0.0
        %224 = vmatpush.msra.mxu0 0.0
        %225 = vmatpush.msra.mxu0 0.0
        %226 = vmatpush.msra.mxu0 0.0
        %227 = vmatpush.msra.mxu0 0.0
        %228 = vmatpush.msra.mxu0 0.0
        %229 = vmatpush.msra.mxu0 %v212
        %230 = vmatmul.f32.gmra.mxu0 %v209
        %v231 = vpop.f32.mrf.mxu0
        %v232 = vadd.f32 0.0, %v231
        %233 = vdwg.mxu0
        %vm234 = vcmp.ge.f32.partialorder %v232, 0.0
        %v235 = vmul.f32 %v232, 0.1
        %v236 = vsel %vm234, %v232, %v235
        %v237 = vld [vmem:[%s2] sm:$0x1]
        %vm238 = vcmask 7168
        %v240 = vsel %vm238, %v236, 0
        %vm242 = vcmask 1040384
        %v244 = vsel %vm242, %v237, 0
        %246 = vmatpush.msra.mxu0 0.0
        %247 = vmatpush.msra.mxu0 0.0
        %248 = vmatpush.msra.mxu0 0.0
        %249 = vmatpush.msra.mxu0 0.0
        %250 = vmatpush.msra.mxu0 0.0
        %251 = vmatpush.msra.mxu0 0.0
        %252 = vmatpush.msra.mxu0 0.0
        %253 = vmatpush.msra.mxu0 0.0
        %254 = vmatpush.msra.mxu0 0.0
        %255 = vmatpush.msra.mxu0 0.0
        %256 = vmatpush.msra.mxu0 0.0
        %257 = vmatpush.msra.mxu0 0.0
        %258 = vmatpush.msra.mxu0 0.0
        %259 = vmatpush.msra.mxu0 0.0
        %260 = vmatpush.msra.mxu0 0.0
        %261 = vmatpush.msra.mxu0 %v244
        %262 = vmatmul.f32.gmra.mxu0 %v240
        %v263 = vpop.f32.mrf.mxu0
        %v264 = vadd.f32 0.0, %v263
        %265 = vdwg.mxu0
        %v266 = vadd.f32 %v264, 3.0
        %v267 = vmax.f32 %v266, 0.0
        %v268 = vmin.f32 %v267, 6.0
        %v269 = vmul.f32 %v264, %v268
        %v270 = vmul.f32 %v269, 0.16666667
        %v271 = vperm.slane %v270, 0
        %v272 = vlaneseq
        %v273 = vshrl.u32 %v272, 7
        %275 = vset.pattern.permute.xlu0 %v273
        %276 = vperm.xlu0 %275, %v271
        %v277 = vpop.permute.xlu0 %276
        %v280 = vunpack.c.l.s4 839922192
        %v281 = vunpack.c.0.s8 %v280
        %v282 = vperm.slane %v277, %v281
        %v284 = vmul.f32 %v189, %v282
        %285 = vst [vmem:[%s188] sm:$0xff] %v284
        %s286 = sand.u32 %s96, 1
        %s287 = scalar_lea.sflag [#allocation4], %s286
        %s288 = sand.u32 %s96, 1
        %s289 = smul.addr %s288, 8
        %s290 = scalar_lea.vmem [#allocation5], %s289
        // Predicated region
        $region37: #{tpu_custom_call.1} parent=31 // pred_check
          %p291 = pneg %p106
        $region38: #{tpu_custom_call.1} parent=31 // pred_check_branch
          %293 = sbr.rel (%p291) target = $region40
        $region39: #{tpu_custom_call.1} parent=31 // pred_region
          %295 = vsyncadd %s287, 0
          %s296 = smul.addr %s20, 2
          %s297 = smul.addr %s296, 4
          %s298 = scalar_lea.hbm %s3, %s297
          %s300 = sshll.u32 %s290, 4
          %s301 = int_to_ptr.vmem [resolvable:$true] %s300
          %s302 = sshll.u32 %s298, 4
          %s303 = int_to_ptr.hbm [resolvable:$true] %s302
          %305 = dma.vmem_to_hbm [thread:$0]  %s301, 128, %s303, %s287
        $region40: #{tpu_custom_call.1} parent=31 // pred_fallthru
          _
      $region32: #{tpu_custom_call.1} parent=5 // pred_fallthru
        _
      %p306 = scmp.le.s32.totalorder 2, %s15
      // Predicated region
      $region41: #{tpu_custom_call.1} parent=5 // pred_check
        %p307 = pneg %p306
      $region42: #{tpu_custom_call.1} parent=5 // pred_check_branch
        %309 = sbr.rel (%p307) target = $region44
      $region43: #{tpu_custom_call.1} parent=5 // pred_region
        %s310 = ssub.s32 %s15, 2
        // Predicated region
        $region45: #{tpu_custom_call.1} parent=43 // pred_check
          %p311 = pneg %p112
        $region46: #{tpu_custom_call.1} parent=43 // pred_check_branch
          %313 = sbr.rel (%p311) target = $region48
        $region47: #{tpu_custom_call.1} parent=43 // pred_region
          %s314 = sand.u32 %s97, 1
          %s315 = scalar_lea.sflag [#allocation4], %s314
          %s316 = sand.u32 %s97, 1
          %s317 = smul.addr %s316, 8
          %s318 = scalar_lea.vmem [#allocation5], %s317
          %320 = dma.done %s315, 128
        $region48: #{tpu_custom_call.1} parent=43 // pred_fallthru
          _
      $region44: #{tpu_custom_call.1} parent=5 // pred_fallthru
        _
    $region6: #{tpu_custom_call.1} parent=1 // loop_footer
      %s19 = sadd.s32 1, %s15
    $region7: #{tpu_custom_call.1} parent=1 // loop_footer_branch
      %14 = sbr.rel target = $region3
    $region8: #{tpu_custom_call.1} parent=1 // loop_exit
      _
    %321 = vsyncpa [#allocation3], 1
    %s322 = scalar_lea.sflag [#allocation3], 1
    %323 = vsyncpa %s322, 1
    %324 = vsyncpa [#allocation4], 1
    %s325 = scalar_lea.sflag [#allocation4], 1
    %326 = vsyncpa %s325, 1

</llo_original>
